<compile_context>
chip_gen: v7x
topology: tpu7x:2x2x1
jax: 0.10.0
libtpu: 0.0.40
codegen_flags: <defaults>
</compile_context>

<pallas_src>
import functools

import jax
import jax.numpy as jnp
from jax.experimental import pallas as pl
from jax.experimental.pallas import tpu as pltpu


def _round_up(x: int, m: int) -> int:
    return ((x + m - 1) // m) * m


def _fused_mlp_kernel(*refs, num_layers: int, out_dims: tuple):
    """refs = (x_ref, w0_ref, ..., w{L-1}_ref, bias_ref, out_ref).

    x_ref:    (N, D0)                 f32 (full-array VMEM block)
    wi_ref:   (Din_i, Dout_i)         f32, pre-transposed to (in, out);
                                      only the last layer's Dout is padded to 128
    bias_ref: (L, 128)                f32, zero-padded rows
    out_ref:  (N, Dout_pad_last)      out dtype
    """
    x_ref = refs[0]
    w_refs = refs[1:1 + num_layers]
    b_ref = refs[1 + num_layers]
    o_ref = refs[2 + num_layers]

    biases = b_ref[...]  # single (L, 128) load
    h = x_ref[...]
    for i in range(num_layers):
        # Contraction on last axis of h / first axis of W_t: direct MXU matmul,
        # no in-kernel transpose.  Intermediate h stays in vregs.
        h = jnp.dot(h, w_refs[i][...], preferred_element_type=jnp.float32)
        # 2-D bias slice (1, out) -> plain broadcast over rows, no rank-reduce.
        h = h + biases[i:i + 1, :out_dims[i]]
        if i != num_layers - 1:
            h = jnp.maximum(h, 0.0)      # ReLU on the f32 accumulator
    o_ref[...] = h.astype(o_ref.dtype)


def prepare_fused_params(params):
    """Transpose (out,in)->(in,out).  Pad ONLY the final layer's out dim to 128
    (dense 128-lane output store); intermediate dims stay exact.  Pack all
    biases into one (L, 128) buffer (single tiny DMA)."""
    num_layers = len(params)
    padded_w, out_dims = [], []
    for i, (w, _) in enumerate(params):
        out_f, in_f = w.shape
        po = _round_up(out_f, 128) if i == num_layers - 1 else out_f
        if po == out_f:
            wt = jnp.asarray(w.T, jnp.float32)
        else:
            wt = jnp.zeros((in_f, po), jnp.float32).at[:, :out_f].set(w.T)
        padded_w.append(wt)
        out_dims.append(po)

    max_po = max(max(out_dims), 128)
    b_packed = jnp.zeros((num_layers, max_po), jnp.float32)
    for i, (_, b) in enumerate(params):
        b_packed = b_packed.at[i, : b.shape[0]].set(b)
    return padded_w, b_packed, tuple(out_dims)


def make_mlp_forward(params):
    """Prepare parameters ONCE and return a jitted forward(x) closure."""
    padded_w, b_packed, out_dims = prepare_fused_params(params)
    num_layers = len(padded_w)
    out_dim = params[-1][0].shape[0]

    kernel = functools.partial(
        _fused_mlp_kernel, num_layers=num_layers, out_dims=out_dims
    )

    @jax.jit
    def forward(x):
        n = x.shape[0]
        x2 = x.reshape(n, -1)  # torch.flatten(x, 1)

        flops = sum(2 * n * w.shape[0] * w.shape[1] for w in padded_w)
        bytes_accessed = 4 * (
            x2.size + sum(w.size for w in padded_w) + b_packed.size
            + n * out_dims[-1]
        )

        out_pad = pl.pallas_call(
            kernel,
            out_shape=jax.ShapeDtypeStruct((n, out_dims[-1]), x2.dtype),
            in_specs=[pl.BlockSpec(memory_space=pltpu.VMEM)] * (num_layers + 2),
            out_specs=pl.BlockSpec(memory_space=pltpu.VMEM),
            cost_estimate=pl.CostEstimate(
                flops=flops, transcendentals=0, bytes_accessed=bytes_accessed
            ),
        )(x2, *padded_w, b_packed)

        return out_pad[:, :out_dim]

    return forward


def init_mlp_params(layers_dim, key):
    """Parameter init matching nn.Linear shapes: W (out, in), b (out,)."""
    params = []
    for i in range(len(layers_dim) - 1):
        fan_in, fan_out = layers_dim[i], layers_dim[i + 1]
        key, kw, kb = jax.random.split(key, 3)
        bound = 1.0 / jnp.sqrt(fan_in)
        w = jax.random.uniform(kw, (fan_out, fan_in), jnp.float32, -bound, bound)
        b = jax.random.uniform(kb, (fan_out,), jnp.float32, -bound, bound)
        params.append((w, b))
    return params


if __name__ == "__main__":
    key = jax.random.PRNGKey(0)
    kx, kp = jax.random.split(key)

    # Small example consistent with the module: input (2, 4, 16, 16) -> 1024.
    layers_dim = [4 * 16 * 16, 32, 32, 16]
    x = jax.random.normal(kx, (2, 4, 16, 16), jnp.float32)
    params = init_mlp_params(layers_dim, kp)

    forward = make_mlp_forward(params)   # parameter prep happens once, here
    out = forward(x)
    jax.block_until_ready(out)

    # Pure-JAX reference of the same semantics.
    h = x.reshape(x.shape[0], -1)
    for i, (w, b) in enumerate(params):
        h = h @ w.T + b
        if i != len(params) - 1:
            h = jnp.maximum(h, 0.0)
    assert out.shape == (2, layers_dim[-1])
    assert jnp.allclose(out, h, atol=1e-4, rtol=1e-4)

    print("KERNEL_OK")
</pallas_src>

<mosaic_0001>
module attributes {stable_mosaic.version = 11 : i64} {
  func.func @_fused_mlp_kernel(%arg0: memref<2x1024xf32, #tpu.memory_space<vmem>>, %arg1: memref<1024x32xf32, #tpu.memory_space<vmem>>, %arg2: memref<32x32xf32, #tpu.memory_space<vmem>>, %arg3: memref<32x128xf32, #tpu.memory_space<vmem>>, %arg4: memref<3x128xf32, #tpu.memory_space<vmem>>, %arg5: memref<2x128xf32, #tpu.memory_space<vmem>>) attributes {dimension_semantics = [], scalar_prefetch = 0 : i64, scratch_operands = 0 : i64, tpu.core_type = #tpu.core_type<tc>} {
    %c0 = arith.constant 0 : index
    %c0_0 = arith.constant 0 : index
    %0 = vector.load %arg4[%c0, %c0_0] : memref<3x128xf32, #tpu.memory_space<vmem>>, vector<3x128xf32>
    %c0_1 = arith.constant 0 : index
    %c0_2 = arith.constant 0 : index
    %1 = vector.load %arg0[%c0_1, %c0_2] : memref<2x1024xf32, #tpu.memory_space<vmem>>, vector<2x1024xf32>
    %c0_3 = arith.constant 0 : index
    %c0_4 = arith.constant 0 : index
    %2 = vector.load %arg1[%c0_3, %c0_4] : memref<1024x32xf32, #tpu.memory_space<vmem>>, vector<1024x32xf32>
    %cst = arith.constant dense<0.000000e+00> : vector<2x32xf32>
    %3 = tpu.matmul %1, %2, %cst {dimension_numbers = #tpu.dot_dimension_numbers<[1], [0], [0], [1], [0, 0, 1, 1], [], []>} : vector<2x1024xf32>, vector<1024x32xf32>, vector<2x32xf32> -> vector<2x32xf32>
    %4 = vector.extract_strided_slice %0 {offsets = [0, 0], sizes = [1, 32], strides = [1, 1]} : vector<3x128xf32> to vector<1x32xf32>
    %5 = vector.broadcast %4 : vector<1x32xf32> to vector<2x32xf32>
    %6 = arith.addf %3, %5 : vector<2x32xf32>
    %cst_5 = arith.constant 0.000000e+00 : f32
    %7 = vector.broadcast %cst_5 : f32 to vector<2x32xf32>
    %8 = arith.maximumf %6, %7 : vector<2x32xf32>
    %c0_6 = arith.constant 0 : index
    %c0_7 = arith.constant 0 : index
    %9 = vector.load %arg2[%c0_6, %c0_7] : memref<32x32xf32, #tpu.memory_space<vmem>>, vector<32x32xf32>
    %cst_8 = arith.constant dense<0.000000e+00> : vector<2x32xf32>
    %10 = tpu.matmul %8, %9, %cst_8 {dimension_numbers = #tpu.dot_dimension_numbers<[1], [0], [0], [1], [0, 0, 1, 1], [], []>} : vector<2x32xf32>, vector<32x32xf32>, vector<2x32xf32> -> vector<2x32xf32>
    %11 = vector.extract_strided_slice %0 {offsets = [1, 0], sizes = [1, 32], strides = [1, 1]} : vector<3x128xf32> to vector<1x32xf32>
    %12 = vector.broadcast %11 : vector<1x32xf32> to vector<2x32xf32>
    %13 = arith.addf %10, %12 : vector<2x32xf32>
    %cst_9 = arith.constant 0.000000e+00 : f32
    %14 = vector.broadcast %cst_9 : f32 to vector<2x32xf32>
    %15 = arith.maximumf %13, %14 : vector<2x32xf32>
    %c0_10 = arith.constant 0 : index
    %c0_11 = arith.constant 0 : index
    %16 = vector.load %arg3[%c0_10, %c0_11] : memref<32x128xf32, #tpu.memory_space<vmem>>, vector<32x128xf32>
    %cst_12 = arith.constant dense<0.000000e+00> : vector<2x128xf32>
    %17 = tpu.matmul %15, %16, %cst_12 {dimension_numbers = #tpu.dot_dimension_numbers<[1], [0], [0], [1], [0, 0, 1, 1], [], []>} : vector<2x32xf32>, vector<32x128xf32>, vector<2x128xf32> -> vector<2x128xf32>
    %18 = vector.extract_strided_slice %0 {offsets = [2, 0], sizes = [1, 128], strides = [1, 1]} : vector<3x128xf32> to vector<1x128xf32>
    %19 = vector.broadcast %18 : vector<1x128xf32> to vector<2x128xf32>
    %20 = arith.addf %17, %19 : vector<2x128xf32>
    %c0_13 = arith.constant 0 : index
    %c0_14 = arith.constant 0 : index
    %21 = vector.load %arg5[%c0_13, %c0_14] : memref<2x128xf32, #tpu.memory_space<vmem>>, vector<2x128xf32>
    tpu.vector_store %arg5[%c0_13, %c0_14], %20 {strides = array<i32>} : memref<2x128xf32, #tpu.memory_space<vmem>>, vector<2x128xf32>,
    return
  }
}

</mosaic_0001>

<llo_original>
// kernel: forward.1
$region0: #{forward.1}
  #allocation0 [shape = 'u32[]', space=smem, size = 0x4, offset = 0x4, fixed_abs, tag = 'smem constant byte address 0x4 - core index']
  #allocation1 [shape = 'u32[144,128]{1,0:T(1,128)}', space=vmem, size = 0x12000, scoped, tag = 'internal scratch']
  %s0 = inlined_call_operand.vmem [shape: f32[2,1024], index: 0, kind: input, shape index: {}]
  %s1 = inlined_call_operand.hbm [shape: f32[1024,32], index: 1, kind: input, shape index: {}]
  %s2 = inlined_call_operand.vmem [shape: f32[32,32], index: 2, kind: input, shape index: {}]
  %s3 = inlined_call_operand.vmem [shape: f32[32,128], index: 3, kind: input, shape index: {}]
  %s4 = inlined_call_operand.vmem [shape: f32[3,128], index: 4, kind: input, shape index: {}]
  %s5 = inlined_call_operand.hbm [shape: f32[2,128], index: 5, kind: output, shape index: {}]
  %s6 = sld [smem:[#allocation0]]
  $region34: #{forward.1} parent=0
    _
  %s8 = ssub.s32 1, %s6
  %s9 = scalar_select 0, %s8, %s6
  $region1: #{forward.1} parent=0
    #allocation2 [shape = 'u8[524288]{0}', space=vmem, size = 0x80000, scoped, tag = 'input window, operand 1, single buffered']
    #allocation3 [shape = 's32[1]{0}', space=sflag, size = 0x4, scoped, tag = 'scoped memory for forward.1']
    #allocation4 [shape = 's32[1]{0}', space=sflag, size = 0x4, scoped, tag = 'scoped memory for forward.1']
    #allocation5 [shape = 'u8[1024]{0}', space=vmem, size = 0x400, scoped, tag = 'output window, operand 0, single buffered']
    %10 = vsyncpa [#allocation3], 0
    %11 = vsyncpa [#allocation4], 0
    // Predicated region
    $region2: #{forward.1} parent=1 // pred_check
      _
    $region3: #{forward.1} parent=1 // pred_check_branch
      %13 = sbr.rel (0) target = $region5
    $region4: #{forward.1} parent=1 // pred_region
      _
    $region5: #{forward.1} parent=1 // pred_fallthru
      _
    // Predicated region
    $region6: #{forward.1} parent=1 // pred_check
      _
    $region7: #{forward.1} parent=1 // pred_check_branch
      %15 = sbr.rel (0) target = $region9
    $region8: #{forward.1} parent=1 // pred_region
      %s17 = ssub.s32 16384, 16384
      %18 = vsyncadd [#allocation3], %s17
      %s19 = sshll.u32 [#allocation2], 4
      %s20 = int_to_ptr.vmem [resolvable:$true] %s19
      %25 = dma.hbm_to_vmem [thread:$0]  %s1, 16384, %s20, [#allocation3], 128, 128, 8
    $region9: #{forward.1} parent=1 // pred_fallthru
      _
    // Predicated region
    $region10: #{forward.1} parent=1 // pred_check
      _
    $region11: #{forward.1} parent=1 // pred_check_branch
      %27 = sbr.rel (0) target = $region13
    $region12: #{forward.1} parent=1 // pred_region
      _
    $region13: #{forward.1} parent=1 // pred_fallthru
      _
    // Predicated region
    $region14: #{forward.1} parent=1 // pred_check
      _
    $region15: #{forward.1} parent=1 // pred_check_branch
      %29 = sbr.rel (0) target = $region17
    $region16: #{forward.1} parent=1 // pred_region
      _
    $region17: #{forward.1} parent=1 // pred_fallthru
      _
    // Predicated region
    $region18: #{forward.1} parent=1 // pred_check
      _
    $region19: #{forward.1} parent=1 // pred_check_branch
      %31 = sbr.rel (0) target = $region21
    $region20: #{forward.1} parent=1 // pred_region
      _
    $region21: #{forward.1} parent=1 // pred_fallthru
      _
    // Predicated region
    $region22: #{forward.1} parent=1 // pred_check
      _
    $region23: #{forward.1} parent=1 // pred_check_branch
      %33 = sbr.rel (0) target = $region25
    $region24: #{forward.1} parent=1 // pred_region
      %34 = dma.done [#allocation3], 16384
    $region25: #{forward.1} parent=1 // pred_fallthru
      _
    %v35 = vld [vmem:[%s4] sm:$0x7]
    %v36 = vld [vmem:[%s0] sm:$0xff]
    %v37 = vld [vmem:[%s0 + $0x8] sm:$0xff]
    %v38 = vld [vmem:[#allocation2] sm:$0xff]
    %v39 = vld [vmem:[#allocation2 + $0x8] sm:$0xff]
    %v40 = vld [vmem:[#allocation2 + $0x10] sm:$0xff]
    %v41 = vld [vmem:[#allocation2 + $0x18] sm:$0xff]
    %v42 = vld [vmem:[#allocation2 + $0x20] sm:$0xff]
    %v43 = vld [vmem:[#allocation2 + $0x28] sm:$0xff]
    %v44 = vld [vmem:[#allocation2 + $0x30] sm:$0xff]
    %v45 = vld [vmem:[#allocation2 + $0x38] sm:$0xff]
    %v46 = vld [vmem:[#allocation2 + $0x40] sm:$0xff]
    %v47 = vld [vmem:[#allocation2 + $0x48] sm:$0xff]
    %v48 = vld [vmem:[#allocation2 + $0x50] sm:$0xff]
    %v49 = vld [vmem:[#allocation2 + $0x58] sm:$0xff]
    %v50 = vld [vmem:[#allocation2 + $0x60] sm:$0xff]
    %v51 = vld [vmem:[#allocation2 + $0x68] sm:$0xff]
    %v52 = vld [vmem:[#allocation2 + $0x70] sm:$0xff]
    %v53 = vld [vmem:[#allocation2 + $0x78] sm:$0xff]
    %v54 = vld [vmem:[#allocation2 + $0x80] sm:$0xff]
    %v55 = vld [vmem:[#allocation2 + $0x88] sm:$0xff]
    %v56 = vld [vmem:[#allocation2 + $0x90] sm:$0xff]
    %v57 = vld [vmem:[#allocation2 + $0x98] sm:$0xff]
    %v58 = vld [vmem:[#allocation2 + $0xa0] sm:$0xff]
    %v59 = vld [vmem:[#allocation2 + $0xa8] sm:$0xff]
    %v60 = vld [vmem:[#allocation2 + $0xb0] sm:$0xff]
    %v61 = vld [vmem:[#allocation2 + $0xb8] sm:$0xff]
    %v62 = vld [vmem:[#allocation2 + $0xc0] sm:$0xff]
    %v63 = vld [vmem:[#allocation2 + $0xc8] sm:$0xff]
    %v64 = vld [vmem:[#allocation2 + $0xd0] sm:$0xff]
    %v65 = vld [vmem:[#allocation2 + $0xd8] sm:$0xff]
    %v66 = vld [vmem:[#allocation2 + $0xe0] sm:$0xff]
    %v67 = vld [vmem:[#allocation2 + $0xe8] sm:$0xff]
    %v68 = vld [vmem:[#allocation2 + $0xf0] sm:$0xff]
    %v69 = vld [vmem:[#allocation2 + $0xf8] sm:$0xff]
    %v70 = vld [vmem:[#allocation2 + $0x100] sm:$0xff]
    %v71 = vld [vmem:[#allocation2 + $0x108] sm:$0xff]
    %v72 = vld [vmem:[#allocation2 + $0x110] sm:$0xff]
    %v73 = vld [vmem:[#allocation2 + $0x118] sm:$0xff]
    %v74 = vld [vmem:[#allocation2 + $0x120] sm:$0xff]
    %v75 = vld [vmem:[#allocation2 + $0x128] sm:$0xff]
    %v76 = vld [vmem:[#allocation2 + $0x130] sm:$0xff]
    %v77 = vld [vmem:[#allocation2 + $0x138] sm:$0xff]
    %v78 = vld [vmem:[#allocation2 + $0x140] sm:$0xff]
    %v79 = vld [vmem:[#allocation2 + $0x148] sm:$0xff]
    %v80 = vld [vmem:[#allocation2 + $0x150] sm:$0xff]
    %v81 = vld [vmem:[#allocation2 + $0x158] sm:$0xff]
    %v82 = vld [vmem:[#allocation2 + $0x160] sm:$0xff]
    %v83 = vld [vmem:[#allocation2 + $0x168] sm:$0xff]
    %v84 = vld [vmem:[#allocation2 + $0x170] sm:$0xff]
    %v85 = vld [vmem:[#allocation2 + $0x178] sm:$0xff]
    %v86 = vld [vmem:[#allocation2 + $0x180] sm:$0xff]
    %v87 = vld [vmem:[#allocation2 + $0x188] sm:$0xff]
    %v88 = vld [vmem:[#allocation2 + $0x190] sm:$0xff]
    %v89 = vld [vmem:[#allocation2 + $0x198] sm:$0xff]
    %v90 = vld [vmem:[#allocation2 + $0x1a0] sm:$0xff]
    %v91 = vld [vmem:[#allocation2 + $0x1a8] sm:$0xff]
    %v92 = vld [vmem:[#allocation2 + $0x1b0] sm:$0xff]
    %v93 = vld [vmem:[#allocation2 + $0x1b8] sm:$0xff]
    %v94 = vld [vmem:[#allocation2 + $0x1c0] sm:$0xff]
    %v95 = vld [vmem:[#allocation2 + $0x1c8] sm:$0xff]
    %v96 = vld [vmem:[#allocation2 + $0x1d0] sm:$0xff]
    %v97 = vld [vmem:[#allocation2 + $0x1d8] sm:$0xff]
    %v98 = vld [vmem:[#allocation2 + $0x1e0] sm:$0xff]
    %v99 = vld [vmem:[#allocation2 + $0x1e8] sm:$0xff]
    %v100 = vld [vmem:[#allocation2 + $0x1f0] sm:$0xff]
    %v101 = vld [vmem:[#allocation2 + $0x1f8] sm:$0xff]
    %v102 = vld [vmem:[#allocation2 + $0x200] sm:$0xff]
    %v103 = vld [vmem:[#allocation2 + $0x208] sm:$0xff]
    %v104 = vld [vmem:[#allocation2 + $0x210] sm:$0xff]
    %v105 = vld [vmem:[#allocation2 + $0x218] sm:$0xff]
    %v106 = vld [vmem:[#allocation2 + $0x220] sm:$0xff]
    %v107 = vld [vmem:[#allocation2 + $0x228] sm:$0xff]
    %v108 = vld [vmem:[#allocation2 + $0x230] sm:$0xff]
    %v109 = vld [vmem:[#allocation2 + $0x238] sm:$0xff]
    %v110 = vld [vmem:[#allocation2 + $0x240] sm:$0xff]
    %v111 = vld [vmem:[#allocation2 + $0x248] sm:$0xff]
    %v112 = vld [vmem:[#allocation2 + $0x250] sm:$0xff]
    %v113 = vld [vmem:[#allocation2 + $0x258] sm:$0xff]
    %v114 = vld [vmem:[#allocation2 + $0x260] sm:$0xff]
    %v115 = vld [vmem:[#allocation2 + $0x268] sm:$0xff]
    %v116 = vld [vmem:[#allocation2 + $0x270] sm:$0xff]
    %v117 = vld [vmem:[#allocation2 + $0x278] sm:$0xff]
    %v118 = vld [vmem:[#allocation2 + $0x280] sm:$0xff]
    %v119 = vld [vmem:[#allocation2 + $0x288] sm:$0xff]
    %v120 = vld [vmem:[#allocation2 + $0x290] sm:$0xff]
    %v121 = vld [vmem:[#allocation2 + $0x298] sm:$0xff]
    %v122 = vld [vmem:[#allocation2 + $0x2a0] sm:$0xff]
    %v123 = vld [vmem:[#allocation2 + $0x2a8] sm:$0xff]
    %v124 = vld [vmem:[#allocation2 + $0x2b0] sm:$0xff]
    %v125 = vld [vmem:[#allocation2 + $0x2b8] sm:$0xff]
    %v126 = vld [vmem:[#allocation2 + $0x2c0] sm:$0xff]
    %v127 = vld [vmem:[#allocation2 + $0x2c8] sm:$0xff]
    %v128 = vld [vmem:[#allocation2 + $0x2d0] sm:$0xff]
    %v129 = vld [vmem:[#allocation2 + $0x2d8] sm:$0xff]
    %v130 = vld [vmem:[#allocation2 + $0x2e0] sm:$0xff]
    %v131 = vld [vmem:[#allocation2 + $0x2e8] sm:$0xff]
    %v132 = vld [vmem:[#allocation2 + $0x2f0] sm:$0xff]
    %v133 = vld [vmem:[#allocation2 + $0x2f8] sm:$0xff]
    %v134 = vld [vmem:[#allocation2 + $0x300] sm:$0xff]
    %v135 = vld [vmem:[#allocation2 + $0x308] sm:$0xff]
    %v136 = vld [vmem:[#allocation2 + $0x310] sm:$0xff]
    %v137 = vld [vmem:[#allocation2 + $0x318] sm:$0xff]
    %v138 = vld [vmem:[#allocation2 + $0x320] sm:$0xff]
    %v139 = vld [vmem:[#allocation2 + $0x328] sm:$0xff]
    %v140 = vld [vmem:[#allocation2 + $0x330] sm:$0xff]
    %v141 = vld [vmem:[#allocation2 + $0x338] sm:$0xff]
    %v142 = vld [vmem:[#allocation2 + $0x340] sm:$0xff]
    %v143 = vld [vmem:[#allocation2 + $0x348] sm:$0xff]
    %v144 = vld [vmem:[#allocation2 + $0x350] sm:$0xff]
    %v145 = vld [vmem:[#allocation2 + $0x358] sm:$0xff]
    %v146 = vld [vmem:[#allocation2 + $0x360] sm:$0xff]
    %v147 = vld [vmem:[#allocation2 + $0x368] sm:$0xff]
    %v148 = vld [vmem:[#allocation2 + $0x370] sm:$0xff]
    %v149 = vld [vmem:[#allocation2 + $0x378] sm:$0xff]
    %v150 = vld [vmem:[#allocation2 + $0x380] sm:$0xff]
    %v151 = vld [vmem:[#allocation2 + $0x388] sm:$0xff]
    %v152 = vld [vmem:[#allocation2 + $0x390] sm:$0xff]
    %v153 = vld [vmem:[#allocation2 + $0x398] sm:$0xff]
    %v154 = vld [vmem:[#allocation2 + $0x3a0] sm:$0xff]
    %v155 = vld [vmem:[#allocation2 + $0x3a8] sm:$0xff]
    %v156 = vld [vmem:[#allocation2 + $0x3b0] sm:$0xff]
    %v157 = vld [vmem:[#allocation2 + $0x3b8] sm:$0xff]
    %v158 = vld [vmem:[#allocation2 + $0x3c0] sm:$0xff]
    %v159 = vld [vmem:[#allocation2 + $0x3c8] sm:$0xff]
    %v160 = vld [vmem:[#allocation2 + $0x3d0] sm:$0xff]
    %v161 = vld [vmem:[#allocation2 + $0x3d8] sm:$0xff]
    %v162 = vld [vmem:[#allocation2 + $0x3e0] sm:$0xff]
    %v163 = vld [vmem:[#allocation2 + $0x3e8] sm:$0xff]
    %v164 = vld [vmem:[#allocation2 + $0x3f0] sm:$0xff]
    %v165 = vld [vmem:[#allocation2 + $0x3f8] sm:$0xff]
    %v166 = vlaneseq
    %v167 = vshrl.u32 %v166, 7
    %v168 = vsub.s32 0, %v167
    %v169 = vrot.slane %v35, %v168
    %v172 = vcombine.high %v36, %v36
    %v174 = vunpack.c.l.s4 1983009808
    %v175 = vunpack.c.0.s8 %v174
    %v176 = vlaneseq
    %v177 = vshrl.u32 %v176, 7
    %v178 = vsub.s32 %v175, %v177
    %v179 = vrot.slane %v36, %v178
    %v181 = vunpack.c.l.s4 1983009808
    %v182 = vunpack.c.0.s8 %v181
    %v183 = vlaneseq
    %v184 = vshrl.u32 %v183, 7
    %v185 = vsub.s32 %v182, %v184
    %v186 = vrot.slane %v172, %v185
    %v187 = vcombine.high %v179, %v179
    %v188 = vcombine.high %v186, %v186
    %v189 = vcombine.high %v37, %v37
    %v191 = vunpack.c.l.s4 1983009808
    %v192 = vunpack.c.0.s8 %v191
    %v193 = vlaneseq
    %v194 = vshrl.u32 %v193, 7
    %v195 = vsub.s32 %v192, %v194
    %v196 = vrot.slane %v37, %v195
    %v198 = vunpack.c.l.s4 1983009808
    %v199 = vunpack.c.0.s8 %v198
    %v200 = vlaneseq
    %v201 = vshrl.u32 %v200, 7
    %v202 = vsub.s32 %v199, %v201
    %v203 = vrot.slane %v189, %v202
    %v204 = vcombine.high %v196, %v196
    %v205 = vcombine.high %v203, %v203
    %214 = vmatprep.subr.mxu0 0.0
    %215 = vmatpush1.msra.mxu0 %v38
    %216 = vmatprep.subr.mxu0 0.0
    %217 = vmatpush1.msra.mxu0 %v39
    %218 = vmatprep.subr.mxu0 0.0
    %219 = vmatpush1.msra.mxu0 %v40
    %220 = vmatprep.subr.mxu0 0.0
    %221 = vmatpush1.msra.mxu0 %v41
    %222 = vmatprep.subr.mxu0 0.0
    %223 = vmatpush1.msra.mxu0 %v42
    %224 = vmatprep.subr.mxu0 0.0
    %225 = vmatpush1.msra.mxu0 %v43
    %226 = vmatprep.subr.mxu0 0.0
    %227 = vmatpush1.msra.mxu0 %v44
    %228 = vmatprep.subr.mxu0 0.0
    %229 = vmatpush1.msra.mxu0 %v45
    %230 = vmatprep.subr.mxu0 0.0
    %231 = vmatpush1.msra.mxu0 %v46
    %232 = vmatprep.subr.mxu0 0.0
    %233 = vmatpush1.msra.mxu0 %v47
    %234 = vmatprep.subr.mxu0 0.0
    %235 = vmatpush1.msra.mxu0 %v48
    %236 = vmatprep.subr.mxu0 0.0
    %237 = vmatpush1.msra.mxu0 %v49
    %238 = vmatprep.subr.mxu0 0.0
    %239 = vmatpush1.msra.mxu0 %v50
    %240 = vmatprep.subr.mxu0 0.0
    %241 = vmatpush1.msra.mxu0 %v51
    %242 = vmatprep.subr.mxu0 0.0
    %243 = vmatpush1.msra.mxu0 %v52
    %244 = vmatprep.subr.mxu0 0.0
    %245 = vmatpush1.msra.mxu0 %v53
    %246 = vmatprep.subr.mxu0 0.0
    %247 = vmatpush1.msra.mxu0 %v54
    %248 = vmatprep.subr.mxu0 0.0
    %249 = vmatpush1.msra.mxu0 %v55
    %250 = vmatprep.subr.mxu0 0.0
    %251 = vmatpush1.msra.mxu0 %v56
    %252 = vmatprep.subr.mxu0 0.0
    %253 = vmatpush1.msra.mxu0 %v57
    %254 = vmatprep.subr.mxu0 0.0
    %255 = vmatpush1.msra.mxu0 %v58
    %256 = vmatprep.subr.mxu0 0.0
    %257 = vmatpush1.msra.mxu0 %v59
    %258 = vmatprep.subr.mxu0 0.0
    %259 = vmatpush1.msra.mxu0 %v60
    %260 = vmatprep.subr.mxu0 0.0
    %261 = vmatpush1.msra.mxu0 %v61
    %262 = vmatprep.subr.mxu0 0.0
    %263 = vmatpush1.msra.mxu0 %v62
    %264 = vmatprep.subr.mxu0 0.0
    %265 = vmatpush1.msra.mxu0 %v63
    %266 = vmatprep.subr.mxu0 0.0
    %267 = vmatpush1.msra.mxu0 %v64
    %268 = vmatprep.subr.mxu0 0.0
    %269 = vmatpush1.msra.mxu0 %v65
    %270 = vmatprep.subr.mxu0 0.0
    %271 = vmatpush1.msra.mxu0 %v66
    %272 = vmatprep.subr.mxu0 0.0
    %273 = vmatpush1.msra.mxu0 %v67
    %274 = vmatprep.subr.mxu0 0.0
    %275 = vmatpush1.msra.mxu0 %v68
    %276 = vmatprep.subr.mxu0 0.0
    %277 = vmatpush1.msra.mxu0 %v69
    %278 = vmatprep.mubr.f32.mxu0 %v187
    %279 = vmatmul.mubr.f32.gmra.mrb[0].mxu0 %v179
    %v280 = vpop.f32.mrb[0].mxu0
    %v281 = vadd.f32 %v169, %v280
    %v282 = vpop.f32.mrb[0].mxu0
    %283 = vdwg.mxu0
    %284 = vmatprep.subr.mxu0 0.0
    %285 = vmatpush1.msra.mxu0 %v70
    %286 = vmatprep.subr.mxu0 0.0
    %287 = vmatpush1.msra.mxu0 %v71
    %288 = vmatprep.subr.mxu0 0.0
    %289 = vmatpush1.msra.mxu0 %v72
    %290 = vmatprep.subr.mxu0 0.0
    %291 = vmatpush1.msra.mxu0 %v73
    %292 = vmatprep.subr.mxu0 0.0
    %293 = vmatpush1.msra.mxu0 %v74
    %294 = vmatprep.subr.mxu0 0.0
    %295 = vmatpush1.msra.mxu0 %v75
    %296 = vmatprep.subr.mxu0 0.0
    %297 = vmatpush1.msra.mxu0 %v76
    %298 = vmatprep.subr.mxu0 0.0
    %299 = vmatpush1.msra.mxu0 %v77
    %300 = vmatprep.subr.mxu0 0.0
    %301 = vmatpush1.msra.mxu0 %v78
    %302 = vmatprep.subr.mxu0 0.0
    %303 = vmatpush1.msra.mxu0 %v79
    %304 = vmatprep.subr.mxu0 0.0
    %305 = vmatpush1.msra.mxu0 %v80
    %306 = vmatprep.subr.mxu0 0.0
    %307 = vmatpush1.msra.mxu0 %v81
    %308 = vmatprep.subr.mxu0 0.0
    %309 = vmatpush1.msra.mxu0 %v82
    %310 = vmatprep.subr.mxu0 0.0
    %311 = vmatpush1.msra.mxu0 %v83
    %312 = vmatprep.subr.mxu0 0.0
    %313 = vmatpush1.msra.mxu0 %v84
    %314 = vmatprep.subr.mxu0 0.0
    %315 = vmatpush1.msra.mxu0 %v85
    %316 = vmatprep.subr.mxu0 0.0
    %317 = vmatpush1.msra.mxu0 %v86
    %318 = vmatprep.subr.mxu0 0.0
    %319 = vmatpush1.msra.mxu0 %v87
    %320 = vmatprep.subr.mxu0 0.0
    %321 = vmatpush1.msra.mxu0 %v88
    %322 = vmatprep.subr.mxu0 0.0
    %323 = vmatpush1.msra.mxu0 %v89
    %324 = vmatprep.subr.mxu0 0.0
    %325 = vmatpush1.msra.mxu0 %v90
    %326 = vmatprep.subr.mxu0 0.0
    %327 = vmatpush1.msra.mxu0 %v91
    %328 = vmatprep.subr.mxu0 0.0
    %329 = vmatpush1.msra.mxu0 %v92
    %330 = vmatprep.subr.mxu0 0.0
    %331 = vmatpush1.msra.mxu0 %v93
    %332 = vmatprep.subr.mxu0 0.0
    %333 = vmatpush1.msra.mxu0 %v94
    %334 = vmatprep.subr.mxu0 0.0
    %335 = vmatpush1.msra.mxu0 %v95
    %336 = vmatprep.subr.mxu0 0.0
    %337 = vmatpush1.msra.mxu0 %v96
    %338 = vmatprep.subr.mxu0 0.0
    %339 = vmatpush1.msra.mxu0 %v97
    %340 = vmatprep.subr.mxu0 0.0
    %341 = vmatpush1.msra.mxu0 %v98
    %342 = vmatprep.subr.mxu0 0.0
    %343 = vmatpush1.msra.mxu0 %v99
    %344 = vmatprep.subr.mxu0 0.0
    %345 = vmatpush1.msra.mxu0 %v100
    %346 = vmatprep.subr.mxu0 0.0
    %347 = vmatpush1.msra.mxu0 %v101
    %348 = vmatprep.mubr.f32.mxu0 %v188
    %349 = vmatmul.mubr.f32.gmra.mrb[0].mxu0 %v186
    %v350 = vpop.f32.mrb[0].mxu0
    %v351 = vadd.f32 %v281, %v350
    %v352 = vpop.f32.mrb[0].mxu0
    %353 = vdwg.mxu0
    %354 = vmatprep.subr.mxu0 0.0
    %355 = vmatpush1.msra.mxu0 %v102
    %356 = vmatprep.subr.mxu0 0.0
    %357 = vmatpush1.msra.mxu0 %v103
    %358 = vmatprep.subr.mxu0 0.0
    %359 = vmatpush1.msra.mxu0 %v104
    %360 = vmatprep.subr.mxu0 0.0
    %361 = vmatpush1.msra.mxu0 %v105
    %362 = vmatprep.subr.mxu0 0.0
    %363 = vmatpush1.msra.mxu0 %v106
    %364 = vmatprep.subr.mxu0 0.0
    %365 = vmatpush1.msra.mxu0 %v107
    %366 = vmatprep.subr.mxu0 0.0
    %367 = vmatpush1.msra.mxu0 %v108
    %368 = vmatprep.subr.mxu0 0.0
    %369 = vmatpush1.msra.mxu0 %v109
    %370 = vmatprep.subr.mxu0 0.0
    %371 = vmatpush1.msra.mxu0 %v110
    %372 = vmatprep.subr.mxu0 0.0
    %373 = vmatpush1.msra.mxu0 %v111
    %374 = vmatprep.subr.mxu0 0.0
    %375 = vmatpush1.msra.mxu0 %v112
    %376 = vmatprep.subr.mxu0 0.0
    %377 = vmatpush1.msra.mxu0 %v113
    %378 = vmatprep.subr.mxu0 0.0
    %379 = vmatpush1.msra.mxu0 %v114
    %380 = vmatprep.subr.mxu0 0.0
    %381 = vmatpush1.msra.mxu0 %v115
    %382 = vmatprep.subr.mxu0 0.0
    %383 = vmatpush1.msra.mxu0 %v116
    %384 = vmatprep.subr.mxu0 0.0
    %385 = vmatpush1.msra.mxu0 %v117
    %386 = vmatprep.subr.mxu0 0.0
    %387 = vmatpush1.msra.mxu0 %v118
    %388 = vmatprep.subr.mxu0 0.0
    %389 = vmatpush1.msra.mxu0 %v119
    %390 = vmatprep.subr.mxu0 0.0
    %391 = vmatpush1.msra.mxu0 %v120
    %392 = vmatprep.subr.mxu0 0.0
    %393 = vmatpush1.msra.mxu0 %v121
    %394 = vmatprep.subr.mxu0 0.0
    %395 = vmatpush1.msra.mxu0 %v122
    %396 = vmatprep.subr.mxu0 0.0
    %397 = vmatpush1.msra.mxu0 %v123
    %398 = vmatprep.subr.mxu0 0.0
    %399 = vmatpush1.msra.mxu0 %v124
    %400 = vmatprep.subr.mxu0 0.0
    %401 = vmatpush1.msra.mxu0 %v125
    %402 = vmatprep.subr.mxu0 0.0
    %403 = vmatpush1.msra.mxu0 %v126
    %404 = vmatprep.subr.mxu0 0.0
    %405 = vmatpush1.msra.mxu0 %v127
    %406 = vmatprep.subr.mxu0 0.0
    %407 = vmatpush1.msra.mxu0 %v128
    %408 = vmatprep.subr.mxu0 0.0
    %409 = vmatpush1.msra.mxu0 %v129
    %410 = vmatprep.subr.mxu0 0.0
    %411 = vmatpush1.msra.mxu0 %v130
    %412 = vmatprep.subr.mxu0 0.0
    %413 = vmatpush1.msra.mxu0 %v131
    %414 = vmatprep.subr.mxu0 0.0
    %415 = vmatpush1.msra.mxu0 %v132
    %416 = vmatprep.subr.mxu0 0.0
    %417 = vmatpush1.msra.mxu0 %v133
    %418 = vmatprep.mubr.f32.mxu0 %v204
    %419 = vmatmul.mubr.f32.gmra.mrb[0].mxu0 %v196
    %v420 = vpop.f32.mrb[0].mxu0
    %v421 = vadd.f32 %v351, %v420
    %v422 = vpop.f32.mrb[0].mxu0
    %423 = vdwg.mxu0
    %424 = vmatprep.subr.mxu0 0.0
    %425 = vmatpush1.msra.mxu0 %v134
    %426 = vmatprep.subr.mxu0 0.0
    %427 = vmatpush1.msra.mxu0 %v135
    %428 = vmatprep.subr.mxu0 0.0
    %429 = vmatpush1.msra.mxu0 %v136
    %430 = vmatprep.subr.mxu0 0.0
    %431 = vmatpush1.msra.mxu0 %v137
    %432 = vmatprep.subr.mxu0 0.0
    %433 = vmatpush1.msra.mxu0 %v138
    %434 = vmatprep.subr.mxu0 0.0
    %435 = vmatpush1.msra.mxu0 %v139
    %436 = vmatprep.subr.mxu0 0.0
    %437 = vmatpush1.msra.mxu0 %v140
    %438 = vmatprep.subr.mxu0 0.0
    %439 = vmatpush1.msra.mxu0 %v141
    %440 = vmatprep.subr.mxu0 0.0
    %441 = vmatpush1.msra.mxu0 %v142
    %442 = vmatprep.subr.mxu0 0.0
    %443 = vmatpush1.msra.mxu0 %v143
    %444 = vmatprep.subr.mxu0 0.0
    %445 = vmatpush1.msra.mxu0 %v144
    %446 = vmatprep.subr.mxu0 0.0
    %447 = vmatpush1.msra.mxu0 %v145
    %448 = vmatprep.subr.mxu0 0.0
    %449 = vmatpush1.msra.mxu0 %v146
    %450 = vmatprep.subr.mxu0 0.0
    %451 = vmatpush1.msra.mxu0 %v147
    %452 = vmatprep.subr.mxu0 0.0
    %453 = vmatpush1.msra.mxu0 %v148
    %454 = vmatprep.subr.mxu0 0.0
    %455 = vmatpush1.msra.mxu0 %v149
    %456 = vmatprep.subr.mxu0 0.0
    %457 = vmatpush1.msra.mxu0 %v150
    %458 = vmatprep.subr.mxu0 0.0
    %459 = vmatpush1.msra.mxu0 %v151
    %460 = vmatprep.subr.mxu0 0.0
    %461 = vmatpush1.msra.mxu0 %v152
    %462 = vmatprep.subr.mxu0 0.0
    %463 = vmatpush1.msra.mxu0 %v153
    %464 = vmatprep.subr.mxu0 0.0
    %465 = vmatpush1.msra.mxu0 %v154
    %466 = vmatprep.subr.mxu0 0.0
    %467 = vmatpush1.msra.mxu0 %v155
    %468 = vmatprep.subr.mxu0 0.0
    %469 = vmatpush1.msra.mxu0 %v156
    %470 = vmatprep.subr.mxu0 0.0
    %471 = vmatpush1.msra.mxu0 %v157
    %472 = vmatprep.subr.mxu0 0.0
    %473 = vmatpush1.msra.mxu0 %v158
    %474 = vmatprep.subr.mxu0 0.0
    %475 = vmatpush1.msra.mxu0 %v159
    %476 = vmatprep.subr.mxu0 0.0
    %477 = vmatpush1.msra.mxu0 %v160
    %478 = vmatprep.subr.mxu0 0.0
    %479 = vmatpush1.msra.mxu0 %v161
    %480 = vmatprep.subr.mxu0 0.0
    %481 = vmatpush1.msra.mxu0 %v162
    %482 = vmatprep.subr.mxu0 0.0
    %483 = vmatpush1.msra.mxu0 %v163
    %484 = vmatprep.subr.mxu0 0.0
    %485 = vmatpush1.msra.mxu0 %v164
    %486 = vmatprep.subr.mxu0 0.0
    %487 = vmatpush1.msra.mxu0 %v165
    %488 = vmatprep.mubr.f32.mxu0 %v205
    %489 = vmatmul.mubr.f32.gmra.mrb[0].mxu0 %v203
    %v490 = vpop.f32.mrb[0].mxu0
    %v491 = vadd.f32 %v421, %v490
    %v492 = vpop.f32.mrb[0].mxu0
    %493 = vdwg.mxu0
    %v494 = vmax.f32 %v491, 0.0
    %v495 = vld [vmem:[%s2] sm:$0xff]
    %v496 = vld [vmem:[%s2 + $0x8] sm:$0xff]
    %v497 = vld [vmem:[%s2 + $0x10] sm:$0xff]
    %v498 = vld [vmem:[%s2 + $0x18] sm:$0xff]
    %v499 = vlaneseq
    %v500 = vshrl.u32 %v499, 7
    %v501 = vsub.s32 1, %v500
    %v502 = vrot.slane %v35, %v501
    %vm503 = vcmask 261120
    %v505 = vsel %vm503, %v494, 0
    %507 = vmatprep.subr.mxu0 0.0
    %508 = vmatpush1.msra.mxu0 %v495
    %509 = vmatprep.subr.mxu0 0.0
    %510 = vmatpush1.msra.mxu0 %v496
    %511 = vmatprep.subr.mxu0 0.0
    %512 = vmatpush1.msra.mxu0 %v497
    %513 = vmatprep.subr.mxu0 0.0
    %514 = vmatpush1.msra.mxu0 %v498
    %515 = vmatprep.subr.mxu0 0.0
    %516 = vmatpush1.msra.mxu0 0.0
    %517 = vmatprep.subr.mxu0 0.0
    %518 = vmatpush1.msra.mxu0 0.0
    %519 = vmatprep.subr.mxu0 0.0
    %520 = vmatpush1.msra.mxu0 0.0
    %521 = vmatprep.subr.mxu0 0.0
    %522 = vmatpush1.msra.mxu0 0.0
    %523 = vmatprep.subr.mxu0 0.0
    %524 = vmatpush1.msra.mxu0 0.0
    %525 = vmatprep.subr.mxu0 0.0
    %526 = vmatpush1.msra.mxu0 0.0
    %527 = vmatprep.subr.mxu0 0.0
    %528 = vmatpush1.msra.mxu0 0.0
    %529 = vmatprep.subr.mxu0 0.0
    %530 = vmatpush1.msra.mxu0 0.0
    %531 = vmatprep.subr.mxu0 0.0
    %532 = vmatpush1.msra.mxu0 0.0
    %533 = vmatprep.subr.mxu0 0.0
    %534 = vmatpush1.msra.mxu0 0.0
    %535 = vmatprep.subr.mxu0 0.0
    %536 = vmatpush1.msra.mxu0 0.0
    %537 = vmatprep.subr.mxu0 0.0
    %538 = vmatpush1.msra.mxu0 0.0
    %539 = vmatprep.subr.mxu0 0.0
    %540 = vmatpush1.msra.mxu0 0.0
    %541 = vmatprep.subr.mxu0 0.0
    %542 = vmatpush1.msra.mxu0 0.0
    %543 = vmatprep.subr.mxu0 0.0
    %544 = vmatpush1.msra.mxu0 0.0
    %545 = vmatprep.subr.mxu0 0.0
    %546 = vmatpush1.msra.mxu0 0.0
    %547 = vmatprep.subr.mxu0 0.0
    %548 = vmatpush1.msra.mxu0 0.0
    %549 = vmatprep.subr.mxu0 0.0
    %550 = vmatpush1.msra.mxu0 0.0
    %551 = vmatprep.subr.mxu0 0.0
    %552 = vmatpush1.msra.mxu0 0.0
    %553 = vmatprep.subr.mxu0 0.0
    %554 = vmatpush1.msra.mxu0 0.0
    %555 = vmatprep.subr.mxu0 0.0
    %556 = vmatpush1.msra.mxu0 0.0
    %557 = vmatprep.subr.mxu0 0.0
    %558 = vmatpush1.msra.mxu0 0.0
    %559 = vmatprep.subr.mxu0 0.0
    %560 = vmatpush1.msra.mxu0 0.0
    %561 = vmatprep.subr.mxu0 0.0
    %562 = vmatpush1.msra.mxu0 0.0
    %563 = vmatprep.subr.mxu0 0.0
    %564 = vmatpush1.msra.mxu0 0.0
    %565 = vmatprep.subr.mxu0 0.0
    %566 = vmatpush1.msra.mxu0 0.0
    %567 = vmatprep.subr.mxu0 0.0
    %568 = vmatpush1.msra.mxu0 0.0
    %569 = vmatprep.subr.mxu0 0.0
    %570 = vmatpush1.msra.mxu0 0.0
    %571 = vmatprep.mubr.f32.mxu0 0.0
    %572 = vmatmul.mubr.f32.gmra.mrb[0].mxu0 %v505
    %v573 = vpop.f32.mrb[0].mxu0
    %v574 = vadd.f32 %v502, %v573
    %v575 = vpop.f32.mrb[0].mxu0
    %576 = vdwg.mxu0
    %v577 = vmax.f32 %v574, 0.0
    %v578 = vld [vmem:[%s3] sm:$0xff]
    %v579 = vld [vmem:[%s3 + $0x8] sm:$0xff]
    %v580 = vld [vmem:[%s3 + $0x10] sm:$0xff]
    %v581 = vld [vmem:[%s3 + $0x18] sm:$0xff]
    %v582 = vlaneseq
    %v583 = vshrl.u32 %v582, 7
    %v584 = vsub.s32 2, %v583
    %v585 = vrot.slane %v35, %v584
    %v587 = vsel %vm503, %v577, 0
    %589 = vmatprep.subr.mxu0 0.0
    %590 = vmatpush1.msra.mxu0 %v578
    %591 = vmatprep.subr.mxu0 0.0
    %592 = vmatpush1.msra.mxu0 %v579
    %593 = vmatprep.subr.mxu0 0.0
    %594 = vmatpush1.msra.mxu0 %v580
    %595 = vmatprep.subr.mxu0 0.0
    %596 = vmatpush1.msra.mxu0 %v581
    %597 = vmatprep.subr.mxu0 0.0
    %598 = vmatpush1.msra.mxu0 0.0
    %599 = vmatprep.subr.mxu0 0.0
    %600 = vmatpush1.msra.mxu0 0.0
    %601 = vmatprep.subr.mxu0 0.0
    %602 = vmatpush1.msra.mxu0 0.0
    %603 = vmatprep.subr.mxu0 0.0
    %604 = vmatpush1.msra.mxu0 0.0
    %605 = vmatprep.subr.mxu0 0.0
    %606 = vmatpush1.msra.mxu0 0.0
    %607 = vmatprep.subr.mxu0 0.0
    %608 = vmatpush1.msra.mxu0 0.0
    %609 = vmatprep.subr.mxu0 0.0
    %610 = vmatpush1.msra.mxu0 0.0
    %611 = vmatprep.subr.mxu0 0.0
    %612 = vmatpush1.msra.mxu0 0.0
    %613 = vmatprep.subr.mxu0 0.0
    %614 = vmatpush1.msra.mxu0 0.0
    %615 = vmatprep.subr.mxu0 0.0
    %616 = vmatpush1.msra.mxu0 0.0
    %617 = vmatprep.subr.mxu0 0.0
    %618 = vmatpush1.msra.mxu0 0.0
    %619 = vmatprep.subr.mxu0 0.0
    %620 = vmatpush1.msra.mxu0 0.0
    %621 = vmatprep.subr.mxu0 0.0
    %622 = vmatpush1.msra.mxu0 0.0
    %623 = vmatprep.subr.mxu0 0.0
    %624 = vmatpush1.msra.mxu0 0.0
    %625 = vmatprep.subr.mxu0 0.0
    %626 = vmatpush1.msra.mxu0 0.0
    %627 = vmatprep.subr.mxu0 0.0
    %628 = vmatpush1.msra.mxu0 0.0
    %629 = vmatprep.subr.mxu0 0.0
    %630 = vmatpush1.msra.mxu0 0.0
    %631 = vmatprep.subr.mxu0 0.0
    %632 = vmatpush1.msra.mxu0 0.0
    %633 = vmatprep.subr.mxu0 0.0
    %634 = vmatpush1.msra.mxu0 0.0
    %635 = vmatprep.subr.mxu0 0.0
    %636 = vmatpush1.msra.mxu0 0.0
    %637 = vmatprep.subr.mxu0 0.0
    %638 = vmatpush1.msra.mxu0 0.0
    %639 = vmatprep.subr.mxu0 0.0
    %640 = vmatpush1.msra.mxu0 0.0
    %641 = vmatprep.subr.mxu0 0.0
    %642 = vmatpush1.msra.mxu0 0.0
    %643 = vmatprep.subr.mxu0 0.0
    %644 = vmatpush1.msra.mxu0 0.0
    %645 = vmatprep.subr.mxu0 0.0
    %646 = vmatpush1.msra.mxu0 0.0
    %647 = vmatprep.subr.mxu0 0.0
    %648 = vmatpush1.msra.mxu0 0.0
    %649 = vmatprep.subr.mxu0 0.0
    %650 = vmatpush1.msra.mxu0 0.0
    %651 = vmatprep.subr.mxu0 0.0
    %652 = vmatpush1.msra.mxu0 0.0
    %653 = vmatprep.mubr.f32.mxu0 0.0
    %654 = vmatmul.mubr.f32.gmra.mrb[0].mxu0 %v587
    %v655 = vpop.f32.mrb[0].mxu0
    %v656 = vadd.f32 %v585, %v655
    %v657 = vpop.f32.mrb[0].mxu0
    %658 = vdwg.mxu0
    %659 = vst [vmem:[#allocation5] sm:$0x3] %v656
    // Predicated region
    $region26: #{forward.1} parent=1 // pred_check
      _
    $region27: #{forward.1} parent=1 // pred_check_branch
      %661 = sbr.rel (0) target = $region29
    $region28: #{forward.1} parent=1 // pred_region
      %s663 = ssub.s32 32, 32
      %664 = vsyncadd [#allocation4], %s663
      %s666 = sshll.u32 [#allocation5], 4
      %s667 = int_to_ptr.vmem [resolvable:$true] %s666
      %669 = dma.vmem_to_hbm [thread:$0]  %s667, 32, %s5, [#allocation4]
    $region29: #{forward.1} parent=1 // pred_fallthru
      _
    // Predicated region
    $region30: #{forward.1} parent=1 // pred_check
      _
    $region31: #{forward.1} parent=1 // pred_check_branch
      %671 = sbr.rel (0) target = $region33
    $region32: #{forward.1} parent=1 // pred_region
      %672 = dma.done [#allocation4], 32
    $region33: #{forward.1} parent=1 // pred_fallthru
      _
    %673 = vsyncpa [#allocation3], 1
    %674 = vsyncpa [#allocation4], 1

</llo_original>
